<compile_context>
chip_gen: v7x
topology: tpu7x:2x2x1
jax: 0.10.0
libtpu: 0.0.40
codegen_flags: <defaults>
</compile_context>

<pallas_src>
import jax
import jax.numpy as jnp
from jax.experimental import pallas as pl
from jax.experimental.pallas import tpu as pltpu


def _round_up(n, m):
    return ((n + m - 1) // m) * m


def merge_layer_kernel(x1_ref, x2_ref, w1a_ref, w1b_ref, b1_ref, w2_ref, b2_ref,
                       out_ref):
    # fc1: contraction split over the concat dim -> two MXU pushes, f32 acc.
    h = jnp.dot(x1_ref[...], w1a_ref[...], preferred_element_type=jnp.float32)
    h = h + jnp.dot(x2_ref[...], w1b_ref[...], preferred_element_type=jnp.float32)
    # Bias + ReLU in f32 on the accumulator.
    h = jnp.maximum(h + b1_ref[...], 0.0)
    # fc2: cast activations back to the matmul dtype, accumulate in f32.
    z = jnp.dot(h.astype(w2_ref.dtype), w2_ref[...],
                preferred_element_type=jnp.float32)
    out_ref[...] = (z + b2_ref[...]).astype(out_ref.dtype)


def init_params(key, dim1, dim2, dim3, dim4):
    """Parameter init mirroring the PyTorch module; weights stored [in, out]."""
    in1, out1 = dim1 + dim2, dim3      # fc1
    in2, out2 = dim3, dim4             # fc2
    k1, k2, k3, k4 = jax.random.split(key, 4)
    # xavier_normal_: std = sqrt(2 / (fan_in + fan_out)).
    std1 = (2.0 / (in1 + out1)) ** 0.5
    std2 = (2.0 / (in2 + out2)) ** 0.5
    w1 = jax.random.normal(k1, (in1, out1), jnp.float32) * std1
    w2 = jax.random.normal(k2, (in2, out2), jnp.float32) * std2
    # torch.nn.Linear default bias init: U(-1/sqrt(fan_in), 1/sqrt(fan_in)).
    b1 = jax.random.uniform(k3, (out1,), jnp.float32, -1.0 / in1 ** 0.5, 1.0 / in1 ** 0.5)
    b2 = jax.random.uniform(k4, (out2,), jnp.float32, -1.0 / in2 ** 0.5, 1.0 / in2 ** 0.5)
    return w1, b1, w2, b2


def merge_layer_forward(x1, x2, params, *, block_b=1024, compute_dtype=jnp.bfloat16):
    """Matches MergeLayer.forward (non_linear=True). Returns (z, z_walk=None)."""
    w1, b1, w2, b2 = params
    B = x1.shape[0]
    d1, d2 = x1.shape[-1], x2.shape[-1]
    d3 = w1.shape[1]
    d4 = w2.shape[1]

    # Batch tile: multiple of 16 (bf16 sublane packing), or the full batch
    # (full-extent block satisfies the (8,128) rule regardless of alignment).
    tb = _round_up(max(int(block_b), 1), 16)
    if tb >= B:
        tb = B
    grid = (pl.cdiv(B, tb),)   # ragged last block handled by Pallas masking

    # Split W1 along the concat dim; cast matmul operands to compute_dtype.
    w1a = w1[:d1].astype(compute_dtype)
    w1b = w1[d1:].astype(compute_dtype)
    w2c = w2.astype(compute_dtype)
    b1r = b1.astype(jnp.float32).reshape(1, d3)
    b2r = b2.astype(jnp.float32).reshape(1, d4)
    x1c = x1.astype(compute_dtype)
    x2c = x2.astype(compute_dtype)

    # VMEM budget: double-buffered x/out tiles + single-buffered resident
    # weights + f32 intermediates; raise the scoped limit so bigger batch
    # tiles still compile on v5e (16 MiB default), capped below v7x physical.
    esz = jnp.dtype(compute_dtype).itemsize
    est = (2 * tb * (d1 + d2) * esz            # x1/x2 tiles (double-buffered)
           + ((d1 + d2) * d3 + d3 * d4) * esz  # weights (single-buffered)
           + (d3 + d4) * 4                     # biases
           + 2 * tb * d4 * 4                   # out tiles (double-buffered)
           + 2 * tb * d3 * 4)                  # f32 intermediates / headroom
    vmem_limit = int(min(max(4 * est, 32 * 1024 * 1024), 64 * 1024 * 1024))

    def resident(shape):
        # Constant block index -> DMA'd once; single buffer frees VMEM.
        return pl.BlockSpec(shape, lambda i: (0, 0), pipeline_mode=pl.Buffered(1))

    z = pl.pallas_call(
        merge_layer_kernel,
        out_shape=jax.ShapeDtypeStruct((B, d4), jnp.float32),
        grid=grid,
        in_specs=[
            pl.BlockSpec((tb, d1), lambda i: (i, 0)),   # x1 tile (pipelined)
            pl.BlockSpec((tb, d2), lambda i: (i, 0)),   # x2 tile (pipelined)
            resident((d1, d3)),                         # W1[:d1]  (VMEM-resident)
            resident((d2, d3)),                         # W1[d1:]
            resident((1, d3)),                          # b1
            resident((d3, d4)),                         # W2
            resident((1, d4)),                          # b2
        ],
        out_specs=pl.BlockSpec((tb, d4), lambda i: (i, 0)),  # full-extent last dim
        compiler_params=pltpu.CompilerParams(
            dimension_semantics=("parallel",),          # batch axis shards across TCs
            vmem_limit_bytes=vmem_limit),
    )(x1c, x2c, w1a, w1b, b1r, w2c, b2r)

    z_walk = None
    return z, z_walk


if __name__ == "__main__":
    # Small shapes; B=20 with block_b=16 -> 2 grid steps incl. a ragged last
    # block (exercises the multi-step pipelined path).  The default block_b
    # call takes the single full-extent-block path.
    B, D1, D2, D3, D4 = 20, 32, 32, 32, 32

    key = jax.random.PRNGKey(0)
    k1, k2, k_params = jax.random.split(key, 3)
    x1 = jax.random.normal(k1, (B, D1), jnp.float32)
    x2 = jax.random.normal(k2, (B, D2), jnp.float32)
    params = init_params(k_params, D1, D2, D3, D4)
    w1, b1, w2, b2 = params

    z, z_walk = merge_layer_forward(x1, x2, params, block_b=16)
    z_full, _ = merge_layer_forward(x1, x2, params)
    z = jax.block_until_ready(z)
    z_full = jax.block_until_ready(z_full)

    # Reference with the same bf16-operand / f32-accumulation precision.
    cd = jnp.bfloat16
    x_cat = jnp.concatenate([x1, x2], axis=-1)
    h_ref = jnp.maximum(
        jnp.dot(x_cat.astype(cd), w1.astype(cd),
                preferred_element_type=jnp.float32) + b1, 0.0)
    z_ref = jnp.dot(h_ref.astype(cd), w2.astype(cd),
                    preferred_element_type=jnp.float32) + b2
    # Full-f32 reference (loose tolerance: only bf16 operand rounding differs).
    z_ref_f32 = jnp.maximum(x_cat @ w1 + b1, 0.0) @ w2 + b2

    assert z.shape == (B, D4)
    assert z_walk is None
    assert jnp.allclose(z, z_full, atol=1e-5, rtol=1e-5)
    assert jnp.allclose(z, z_ref, atol=2e-2, rtol=2e-2)
    assert jnp.allclose(z_full, z_ref, atol=2e-2, rtol=2e-2)
    assert jnp.allclose(z, z_ref_f32, atol=1e-1, rtol=1e-1)

    print("KERNEL_OK")
</pallas_src>

<mosaic_0001>
module attributes {stable_mosaic.version = 11 : i64} {
  func.func @merge_layer_kernel(%arg0: i32, %arg1: memref<16x32xbf16, #tpu.memory_space<vmem>>, %arg2: memref<16x32xbf16, #tpu.memory_space<vmem>>, %arg3: memref<32x32xbf16, #tpu.memory_space<vmem>>, %arg4: memref<32x32xbf16, #tpu.memory_space<vmem>>, %arg5: memref<1x32xf32, #tpu.memory_space<vmem>>, %arg6: memref<32x32xbf16, #tpu.memory_space<vmem>>, %arg7: memref<1x32xf32, #tpu.memory_space<vmem>>, %arg8: memref<16x32xf32, #tpu.memory_space<vmem>>) attributes {dimension_semantics = [#tpu.dimension_semantics<parallel>], iteration_bounds = array<i64: 2>, scalar_prefetch = 0 : i64, scratch_operands = 0 : i64, tpu.core_type = #tpu.core_type<tc>, window_params = [{transform_indices = @transform_0, window_bounds = array<i64: 16, 32>}, {transform_indices = @transform_1, window_bounds = array<i64: 16, 32>}, {pipeline_mode = #tpu.pipeline_mode<synchronous>, transform_indices = @transform_2, window_bounds = array<i64: 32, 32>}, {pipeline_mode = #tpu.pipeline_mode<synchronous>, transform_indices = @transform_3, window_bounds = array<i64: 32, 32>}, {pipeline_mode = #tpu.pipeline_mode<synchronous>, transform_indices = @transform_4, window_bounds = array<i64: 1, 32>}, {pipeline_mode = #tpu.pipeline_mode<synchronous>, transform_indices = @transform_5, window_bounds = array<i64: 32, 32>}, {pipeline_mode = #tpu.pipeline_mode<synchronous>, transform_indices = @transform_6, window_bounds = array<i64: 1, 32>}, {transform_indices = @transform_7, window_bounds = array<i64: 16, 32>}]} {
    %c0 = arith.constant 0 : index
    %c0_0 = arith.constant 0 : index
    %0 = vector.load %arg1[%c0, %c0_0] : memref<16x32xbf16, #tpu.memory_space<vmem>>, vector<16x32xbf16>
    %c0_1 = arith.constant 0 : index
    %c0_2 = arith.constant 0 : index
    %1 = vector.load %arg3[%c0_1, %c0_2] : memref<32x32xbf16, #tpu.memory_space<vmem>>, vector<32x32xbf16>
    %cst = arith.constant dense<0.000000e+00> : vector<16x32xf32>
    %2 = tpu.matmul %0, %1, %cst {dimension_numbers = #tpu.dot_dimension_numbers<[1], [0], [0], [1], [0, 0, 1, 1], [], []>} : vector<16x32xbf16>, vector<32x32xbf16>, vector<16x32xf32> -> vector<16x32xf32>
    %c0_3 = arith.constant 0 : index
    %c0_4 = arith.constant 0 : index
    %3 = vector.load %arg2[%c0_3, %c0_4] : memref<16x32xbf16, #tpu.memory_space<vmem>>, vector<16x32xbf16>
    %c0_5 = arith.constant 0 : index
    %c0_6 = arith.constant 0 : index
    %4 = vector.load %arg4[%c0_5, %c0_6] : memref<32x32xbf16, #tpu.memory_space<vmem>>, vector<32x32xbf16>
    %cst_7 = arith.constant dense<0.000000e+00> : vector<16x32xf32>
    %5 = tpu.matmul %3, %4, %cst_7 {dimension_numbers = #tpu.dot_dimension_numbers<[1], [0], [0], [1], [0, 0, 1, 1], [], []>} : vector<16x32xbf16>, vector<32x32xbf16>, vector<16x32xf32> -> vector<16x32xf32>
    %6 = arith.addf %2, %5 : vector<16x32xf32>
    %c0_8 = arith.constant 0 : index
    %c0_9 = arith.constant 0 : index
    %7 = vector.load %arg5[%c0_8, %c0_9] : memref<1x32xf32, #tpu.memory_space<vmem>>, vector<1x32xf32>
    %8 = vector.broadcast %7 : vector<1x32xf32> to vector<16x32xf32>
    %9 = arith.addf %6, %8 : vector<16x32xf32>
    %cst_10 = arith.constant 0.000000e+00 : f32
    %10 = vector.broadcast %cst_10 : f32 to vector<16x32xf32>
    %11 = arith.maximumf %9, %10 : vector<16x32xf32>
    %12 = arith.truncf %11 : vector<16x32xf32> to vector<16x32xbf16>
    %c0_11 = arith.constant 0 : index
    %c0_12 = arith.constant 0 : index
    %13 = vector.load %arg6[%c0_11, %c0_12] : memref<32x32xbf16, #tpu.memory_space<vmem>>, vector<32x32xbf16>
    %cst_13 = arith.constant dense<0.000000e+00> : vector<16x32xf32>
    %14 = tpu.matmul %12, %13, %cst_13 {dimension_numbers = #tpu.dot_dimension_numbers<[1], [0], [0], [1], [0, 0, 1, 1], [], []>} : vector<16x32xbf16>, vector<32x32xbf16>, vector<16x32xf32> -> vector<16x32xf32>
    %c0_14 = arith.constant 0 : index
    %c0_15 = arith.constant 0 : index
    %15 = vector.load %arg7[%c0_14, %c0_15] : memref<1x32xf32, #tpu.memory_space<vmem>>, vector<1x32xf32>
    %16 = vector.broadcast %15 : vector<1x32xf32> to vector<16x32xf32>
    %17 = arith.addf %14, %16 : vector<16x32xf32>
    %c0_16 = arith.constant 0 : index
    %c0_17 = arith.constant 0 : index
    %18 = vector.load %arg8[%c0_16, %c0_17] : memref<16x32xf32, #tpu.memory_space<vmem>>, vector<16x32xf32>
    tpu.vector_store %arg8[%c0_16, %c0_17], %17 {strides = array<i32>} : memref<16x32xf32, #tpu.memory_space<vmem>>, vector<16x32xf32>,
    return
  }
  func.func @transform_0(%arg0: i32) -> (i32, i32) {
    %c0_i32 = arith.constant 0 : i32
    %c0_i32_0 = arith.constant 0 : i32
    return %arg0, %c0_i32 : i32, i32
  }
  func.func @transform_1(%arg0: i32) -> (i32, i32) {
    %c0_i32 = arith.constant 0 : i32
    %c0_i32_0 = arith.constant 0 : i32
    return %arg0, %c0_i32 : i32, i32
  }
  func.func @transform_2(%arg0: i32) -> (i32, i32) {
    %c0_i32 = arith.constant 0 : i32
    %c0_i32_0 = arith.constant 0 : i32
    %c0_i32_1 = arith.constant 0 : i32
    return %c0_i32, %c0_i32_0 : i32, i32
  }
  func.func @transform_3(%arg0: i32) -> (i32, i32) {
    %c0_i32 = arith.constant 0 : i32
    %c0_i32_0 = arith.constant 0 : i32
    %c0_i32_1 = arith.constant 0 : i32
    return %c0_i32, %c0_i32_0 : i32, i32
  }
  func.func @transform_4(%arg0: i32) -> (i32, i32) {
    %c0_i32 = arith.constant 0 : i32
    %c0_i32_0 = arith.constant 0 : i32
    %c0_i32_1 = arith.constant 0 : i32
    return %c0_i32, %c0_i32_0 : i32, i32
  }
  func.func @transform_5(%arg0: i32) -> (i32, i32) {
    %c0_i32 = arith.constant 0 : i32
    %c0_i32_0 = arith.constant 0 : i32
    %c0_i32_1 = arith.constant 0 : i32
    return %c0_i32, %c0_i32_0 : i32, i32
  }
  func.func @transform_6(%arg0: i32) -> (i32, i32) {
    %c0_i32 = arith.constant 0 : i32
    %c0_i32_0 = arith.constant 0 : i32
    %c0_i32_1 = arith.constant 0 : i32
    return %c0_i32, %c0_i32_0 : i32, i32
  }
  func.func @transform_7(%arg0: i32) -> (i32, i32) {
    %c0_i32 = arith.constant 0 : i32
    %c0_i32_0 = arith.constant 0 : i32
    return %arg0, %c0_i32 : i32, i32
  }
}

</mosaic_0001>

<llo_original>
// kernel: tpu_custom_call.1
$region0: #{tpu_custom_call.1}
  #allocation0 [shape = 'u32[]', space=smem, size = 0x4, offset = 0x4, fixed_abs, tag = 'smem constant byte address 0x4 - core index']
  #allocation1 [shape = 'u32[144,128]{1,0:T(1,128)}', space=vmem, size = 0x12000, scoped, tag = 'internal scratch']
  %s0 = inlined_call_operand.hbm [shape: bf16[20,32], index: 0, kind: input, shape index: {}]
  %s1 = inlined_call_operand.hbm [shape: bf16[20,32], index: 1, kind: input, shape index: {}]
  %s2 = inlined_call_operand.hbm [shape: bf16[32,32], index: 2, kind: input, shape index: {}]
  %s3 = inlined_call_operand.hbm [shape: bf16[32,32], index: 3, kind: input, shape index: {}]
  %s4 = inlined_call_operand.vmem [shape: f32[1,32], index: 4, kind: input, shape index: {}]
  %s5 = inlined_call_operand.vmem [shape: bf16[32,32], index: 5, kind: input, shape index: {}]
  %s6 = inlined_call_operand.vmem [shape: f32[1,32], index: 6, kind: input, shape index: {}]
  %s7 = inlined_call_operand.hbm [shape: f32[20,32], index: 7, kind: output, shape index: {}]
  %s8 = sld [smem:[#allocation0]]
  $region77: #{tpu_custom_call.1} parent=0
    _
  %s10 = ssub.s32 1, %s8
  %s11 = scalar_select 0, %s10, %s8
  $region1: #{tpu_custom_call.1} parent=0
    #allocation2 [shape = 'u8[8192]{0}', space=vmem, size = 0x2000, scoped, tag = 'input window, operand 0']
    #allocation3 [shape = 's32[2]{0}', space=sflag, size = 0x8, scoped, tag = 'scoped memory for tpu_custom_call.1']
    #allocation4 [shape = 's32[2]{0}', space=sflag, size = 0x8, scoped, tag = 'scoped memory for tpu_custom_call.1']
    #allocation5 [shape = 'u8[8192]{0}', space=vmem, size = 0x2000, scoped, tag = 'input window, operand 1']
    #allocation6 [shape = 's32[2]{0}', space=sflag, size = 0x8, scoped, tag = 'scoped memory for tpu_custom_call.1']
    #allocation7 [shape = 'u8[8192]{0}', space=vmem, size = 0x2000, scoped, tag = 'input window, operand 2, single buffered']
    #allocation8 [shape = 'u8[8192]{0}', space=vmem, size = 0x2000, scoped, tag = 'input window, operand 3, single buffered']
    #allocation9 [shape = 's32[1]{0}', space=sflag, size = 0x4, scoped, tag = 'scoped memory for tpu_custom_call.1']
    #allocation10 [shape = 'u8[16384]{0}', space=vmem, size = 0x4000, scoped, tag = 'output window, operand 0']
    %12 = vsyncpa [#allocation3], 0
    %s13 = scalar_lea.sflag [#allocation3], 1
    %14 = vsyncpa %s13, 0
    %15 = vsyncpa [#allocation6], 0
    %s16 = scalar_lea.sflag [#allocation6], 1
    %17 = vsyncpa %s16, 0
    %18 = vsyncpa [#allocation9], 0
    %19 = vsyncpa [#allocation4], 0
    %s20 = scalar_lea.sflag [#allocation4], 1
    %21 = vsyncpa %s20, 0
    loop: start=0, step=1, limit=4
    $region2: #{tpu_custom_call.1} parent=1 // loop_pre_header
      _
    $region3: #{tpu_custom_call.1} parent=1 // loop_header
      %s23 = sphi 0, %s27
      %p24 = scmp.ge.s32.totalorder %s23, 4
      %s33 = sphi 0, %s35
      %s36 = sphi 0, %s33
      %s37 = sphi 0, %s36
      %s53 = sphi 0, %s37
      %s59 = sphi 0, %s61
      %s62 = sphi 0, %s59
      %s63 = sphi 0, %s62
      %s79 = sphi 0, %s63
      %s83 = sphi 0, %s83
      %s85 = sphi 0, %s83
      %s86 = sphi 0, %s85
      %s100 = sphi 0, %s86
      %s104 = sphi 0, %s104
      %s106 = sphi 0, %s104
      %s107 = sphi 0, %s106
      %s121 = sphi 0, %s107
      %s125 = sphi 0, %s125
      %s127 = sphi 0, %s125
      %s128 = sphi 0, %s127
      %s142 = sphi 0, %s128
      %s146 = sphi 0, %s146
      %s148 = sphi 0, %s146
      %s149 = sphi 0, %s148
      %s163 = sphi 0, %s149
      %s167 = sphi 0, %s167
      %s169 = sphi 0, %s167
      %s170 = sphi 0, %s169
      %s184 = sphi 0, %s170
      %s190 = sphi 0, %s192
      %s193 = sphi 0, %s190
      %s194 = sphi 0, %s193
      %s210 = sphi 0, %s194
    $region4: #{tpu_custom_call.1} parent=1 // loop_header_branch
      %26 = sbr.rel (%p24) target = $region8
    $region5: #{tpu_custom_call.1} parent=1 // loop_body
      %s28 = ssub.s32 %s23, 1
      %s29 = ssub.s32 %s23, 2
      %s30 = sadd.s32 %s23, 1
      %s31 = ssub.s32 %s23, %s30
      %p32 = scmp.eq.s32.totalorder %s31, 0
      %s34 = sadd.s32 %s33, 1
      %s35 = scalar_select %p32, %s33, %s34
      %p38 = pneg %p32
      %p39 = scmp.eq.s32.totalorder %s23, 1
      %p40 = por %p38, %p39
      %p41 = scmp.ne.s32.totalorder %s33, %s36
      %p42 = scmp.eq.s32.totalorder %s23, 0
      %p43 = por %p41, %p42
      %p44 = scmp.ne.s32.totalorder %s33, %s36
      %p45 = scmp.eq.s32.totalorder %s28, 1
      %p46 = por %p44, %p45
      %p47 = scmp.ne.s32.totalorder %s36, %s37
      %p48 = scmp.eq.s32.totalorder %s28, 0
      %p49 = por %p47, %p48
      %p50 = scmp.ne.s32.totalorder %s36, %s37
      %p51 = scmp.eq.s32.totalorder %s29, 1
      %p52 = por %p50, %p51
      %p54 = scmp.ne.s32.totalorder %s37, %s53
      %p55 = scmp.eq.s32.totalorder %s29, 0
      %p56 = por %p54, %p55
      %s57 = ssub.s32 %s23, %s30
      %p58 = scmp.eq.s32.totalorder %s57, 0
      %s60 = sadd.s32 %s59, 1
      %s61 = scalar_select %p58, %s59, %s60
      %p64 = pneg %p58
      %p65 = scmp.eq.s32.totalorder %s23, 1
      %p66 = por %p64, %p65
      %p67 = scmp.ne.s32.totalorder %s59, %s62
      %p68 = scmp.eq.s32.totalorder %s23, 0
      %p69 = por %p67, %p68
      %p70 = scmp.ne.s32.totalorder %s59, %s62
      %p71 = scmp.eq.s32.totalorder %s28, 1
      %p72 = por %p70, %p71
      %p73 = scmp.ne.s32.totalorder %s62, %s63
      %p74 = scmp.eq.s32.totalorder %s28, 0
      %p75 = por %p73, %p74
      %p76 = scmp.ne.s32.totalorder %s62, %s63
      %p77 = scmp.eq.s32.totalorder %s29, 1
      %p78 = por %p76, %p77
      %p80 = scmp.ne.s32.totalorder %s63, %s79
      %p81 = scmp.eq.s32.totalorder %s29, 0
      %p82 = por %p80, %p81
      %s84 = sadd.s32 %s83, 1
      %p87 = scmp.eq.s32.totalorder %s23, 1
      %p88 = scmp.ne.s32.totalorder %s83, %s85
      %p89 = scmp.eq.s32.totalorder %s23, 0
      %p90 = por %p88, %p89
      %p91 = scmp.ne.s32.totalorder %s83, %s85
      %p92 = scmp.eq.s32.totalorder %s28, 1
      %p93 = por %p91, %p92
      %p94 = scmp.ne.s32.totalorder %s85, %s86
      %p95 = scmp.eq.s32.totalorder %s28, 0
      %p96 = por %p94, %p95
      %p97 = scmp.ne.s32.totalorder %s85, %s86
      %p98 = scmp.eq.s32.totalorder %s29, 1
      %p99 = por %p97, %p98
      %p101 = scmp.ne.s32.totalorder %s86, %s100
      %p102 = scmp.eq.s32.totalorder %s29, 0
      %p103 = por %p101, %p102
      %s105 = sadd.s32 %s104, 1
      %p108 = scmp.eq.s32.totalorder %s23, 1
      %p109 = scmp.ne.s32.totalorder %s104, %s106
      %p110 = scmp.eq.s32.totalorder %s23, 0
      %p111 = por %p109, %p110
      %p112 = scmp.ne.s32.totalorder %s104, %s106
      %p113 = scmp.eq.s32.totalorder %s28, 1
      %p114 = por %p112, %p113
      %p115 = scmp.ne.s32.totalorder %s106, %s107
      %p116 = scmp.eq.s32.totalorder %s28, 0
      %p117 = por %p115, %p116
      %p118 = scmp.ne.s32.totalorder %s106, %s107
      %p119 = scmp.eq.s32.totalorder %s29, 1
      %p120 = por %p118, %p119
      %p122 = scmp.ne.s32.totalorder %s107, %s121
      %p123 = scmp.eq.s32.totalorder %s29, 0
      %p124 = por %p122, %p123
      %s126 = sadd.s32 %s125, 1
      %p129 = scmp.eq.s32.totalorder %s23, 1
      %p130 = scmp.ne.s32.totalorder %s125, %s127
      %p131 = scmp.eq.s32.totalorder %s23, 0
      %p132 = por %p130, %p131
      %p133 = scmp.ne.s32.totalorder %s125, %s127
      %p134 = scmp.eq.s32.totalorder %s28, 1
      %p135 = por %p133, %p134
      %p136 = scmp.ne.s32.totalorder %s127, %s128
      %p137 = scmp.eq.s32.totalorder %s28, 0
      %p138 = por %p136, %p137
      %p139 = scmp.ne.s32.totalorder %s127, %s128
      %p140 = scmp.eq.s32.totalorder %s29, 1
      %p141 = por %p139, %p140
      %p143 = scmp.ne.s32.totalorder %s128, %s142
      %p144 = scmp.eq.s32.totalorder %s29, 0
      %p145 = por %p143, %p144
      %s147 = sadd.s32 %s146, 1
      %p150 = scmp.eq.s32.totalorder %s23, 1
      %p151 = scmp.ne.s32.totalorder %s146, %s148
      %p152 = scmp.eq.s32.totalorder %s23, 0
      %p153 = por %p151, %p152
      %p154 = scmp.ne.s32.totalorder %s146, %s148
      %p155 = scmp.eq.s32.totalorder %s28, 1
      %p156 = por %p154, %p155
      %p157 = scmp.ne.s32.totalorder %s148, %s149
      %p158 = scmp.eq.s32.totalorder %s28, 0
      %p159 = por %p157, %p158
      %p160 = scmp.ne.s32.totalorder %s148, %s149
      %p161 = scmp.eq.s32.totalorder %s29, 1
      %p162 = por %p160, %p161
      %p164 = scmp.ne.s32.totalorder %s149, %s163
      %p165 = scmp.eq.s32.totalorder %s29, 0
      %p166 = por %p164, %p165
      %s168 = sadd.s32 %s167, 1
      %p171 = scmp.eq.s32.totalorder %s23, 1
      %p172 = scmp.ne.s32.totalorder %s167, %s169
      %p173 = scmp.eq.s32.totalorder %s23, 0
      %p174 = por %p172, %p173
      %p175 = scmp.ne.s32.totalorder %s167, %s169
      %p176 = scmp.eq.s32.totalorder %s28, 1
      %p177 = por %p175, %p176
      %p178 = scmp.ne.s32.totalorder %s169, %s170
      %p179 = scmp.eq.s32.totalorder %s28, 0
      %p180 = por %p178, %p179
      %p181 = scmp.ne.s32.totalorder %s169, %s170
      %p182 = scmp.eq.s32.totalorder %s29, 1
      %p183 = por %p181, %p182
      %p185 = scmp.ne.s32.totalorder %s170, %s184
      %p186 = scmp.eq.s32.totalorder %s29, 0
      %p187 = por %p185, %p186
      %s188 = ssub.s32 %s23, %s30
      %p189 = scmp.eq.s32.totalorder %s188, 0
      %s191 = sadd.s32 %s190, 1
      %s192 = scalar_select %p189, %s190, %s191
      %p195 = pneg %p189
      %p196 = scmp.eq.s32.totalorder %s23, 1
      %p197 = por %p195, %p196
      %p198 = scmp.ne.s32.totalorder %s190, %s193
      %p199 = scmp.eq.s32.totalorder %s23, 0
      %p200 = por %p198, %p199
      %p201 = scmp.ne.s32.totalorder %s190, %s193
      %p202 = scmp.eq.s32.totalorder %s28, 1
      %p203 = por %p201, %p202
      %p204 = scmp.ne.s32.totalorder %s193, %s194
      %p205 = scmp.eq.s32.totalorder %s28, 0
      %p206 = por %p204, %p205
      %p207 = scmp.ne.s32.totalorder %s193, %s194
      %p208 = scmp.eq.s32.totalorder %s29, 1
      %p209 = por %p207, %p208
      %p211 = scmp.ne.s32.totalorder %s194, %s210
      %p212 = scmp.eq.s32.totalorder %s29, 0
      %p213 = por %p211, %p212
      %p214 = scmp.le.s32.totalorder 1, %s23
      %p215 = scmp.lt.s32.totalorder %s23, 3
      %p216 = pnand %p214, %p215
      %p217 = pneg %p216
      // Predicated region
      $region9: #{tpu_custom_call.1} parent=5 // pred_check
        _
      $region10: #{tpu_custom_call.1} parent=5 // pred_check_branch
        %219 = sbr.rel (%p216) target = $region12
      $region11: #{tpu_custom_call.1} parent=5 // pred_region
        %s220 = ssub.s32 %s23, 1
        // Predicated region
        $region13: #{tpu_custom_call.1} parent=11 // pred_check
          %p221 = pneg %p96
        $region14: #{tpu_custom_call.1} parent=11 // pred_check_branch
          %223 = sbr.rel (%p221) target = $region16
        $region15: #{tpu_custom_call.1} parent=11 // pred_region
          %s225 = ssub.s32 256, 256
          %226 = vsyncadd [#allocation6], %s225
          %s227 = sshll.u32 [#allocation7], 4
          %s228 = int_to_ptr.vmem [resolvable:$true] %s227
          %233 = dma.hbm_to_vmem [thread:$0]  %s2, 256, %s228, [#allocation6], 64, 64, 4
        $region16: #{tpu_custom_call.1} parent=11 // pred_fallthru
          _
        // Predicated region
        $region17: #{tpu_custom_call.1} parent=11 // pred_check
          %p234 = pneg %p117
        $region18: #{tpu_custom_call.1} parent=11 // pred_check_branch
          %236 = sbr.rel (%p234) target = $region20
        $region19: #{tpu_custom_call.1} parent=11 // pred_region
          %s238 = ssub.s32 256, 256
          %239 = vsyncadd [#allocation9], %s238
          %s240 = sshll.u32 [#allocation8], 4
          %s241 = int_to_ptr.vmem [resolvable:$true] %s240
          %246 = dma.hbm_to_vmem [thread:$0]  %s3, 256, %s241, [#allocation9], 64, 64, 4
        $region20: #{tpu_custom_call.1} parent=11 // pred_fallthru
          _
        // Predicated region
        $region21: #{tpu_custom_call.1} parent=11 // pred_check
          %p247 = pneg %p138
        $region22: #{tpu_custom_call.1} parent=11 // pred_check_branch
          %249 = sbr.rel (%p247) target = $region24
        $region23: #{tpu_custom_call.1} parent=11 // pred_region
          _
        $region24: #{tpu_custom_call.1} parent=11 // pred_fallthru
          _
        // Predicated region
        $region25: #{tpu_custom_call.1} parent=11 // pred_check
          %p250 = pneg %p159
        $region26: #{tpu_custom_call.1} parent=11 // pred_check_branch
          %252 = sbr.rel (%p250) target = $region28
        $region27: #{tpu_custom_call.1} parent=11 // pred_region
          _
        $region28: #{tpu_custom_call.1} parent=11 // pred_fallthru
          _
        // Predicated region
        $region29: #{tpu_custom_call.1} parent=11 // pred_check
          %p253 = pneg %p180
        $region30: #{tpu_custom_call.1} parent=11 // pred_check_branch
          %255 = sbr.rel (%p253) target = $region32
        $region31: #{tpu_custom_call.1} parent=11 // pred_region
          _
        $region32: #{tpu_custom_call.1} parent=11 // pred_fallthru
          _
      $region12: #{tpu_custom_call.1} parent=5 // pred_fallthru
        _
      %p256 = scmp.lt.s32.totalorder %s23, 2
      // Predicated region
      $region33: #{tpu_custom_call.1} parent=5 // pred_check
        %p257 = pneg %p256
      $region34: #{tpu_custom_call.1} parent=5 // pred_check_branch
        %259 = sbr.rel (%p257) target = $region36
      $region35: #{tpu_custom_call.1} parent=5 // pred_region
        // Predicated region
        $region37: #{tpu_custom_call.1} parent=35 // pred_check
          %p260 = pneg %p43
        $region38: #{tpu_custom_call.1} parent=35 // pred_check_branch
          %262 = sbr.rel (%p260) target = $region40
        $region39: #{tpu_custom_call.1} parent=35 // pred_region
          %s263 = sand.u32 %s33, 1
          %s264 = scalar_lea.sflag [#allocation3], %s263
          %s265 = sand.u32 %s33, 1
          %s266 = smul.addr %s265, 8
          %s267 = scalar_lea.vmem [#allocation2], %s266
          %s268 = smul.u32 2, %s23
          %s269 = ssub.s32 3, %s268
          %p270 = scmp.lt.s32.totalorder %s269, 2
          %s271 = scalar_select %p270, %s269, 2
          %s272 = smul.u32 64, %s271
          %s274 = ssub.s32 128, %s272
          %275 = vsyncadd %s264, %s274
          %p276 = scmp.ne.s32.totalorder 0, %s272
          %s277 = smul.addr %s268, 64
          %s278 = scalar_lea.hbm %s0, %s277
          %s279 = smul.u32 4, %s271
          %s280 = sshll.u32 %s267, 4
          %s281 = int_to_ptr.vmem [resolvable:$true] %s280
          %s282 = sshll.u32 %s279, 4
          %286 = dma.hbm_to_vmem [thread:$0]  (%p276), %s278, %s282, %s281, %s264, 64, 64, 4
        $region40: #{tpu_custom_call.1} parent=35 // pred_fallthru
          _
        // Predicated region
        $region41: #{tpu_custom_call.1} parent=35 // pred_check
          %p287 = pneg %p69
        $region42: #{tpu_custom_call.1} parent=35 // pred_check_branch
          %289 = sbr.rel (%p287) target = $region44
        $region43: #{tpu_custom_call.1} parent=35 // pred_region
          %s290 = sand.u32 %s23, 1
          %s291 = scalar_lea.sflag [#allocation6], %s290
          %s292 = sand.u32 %s59, 1
          %s293 = smul.addr %s292, 8
          %s294 = scalar_lea.vmem [#allocation5], %s293
          %s295 = smul.u32 2, %s23
          %s296 = ssub.s32 3, %s295
          %p297 = scmp.lt.s32.totalorder %s296, 2
          %s298 = scalar_select %p297, %s296, 2
          %s299 = smul.u32 64, %s298
          %s301 = ssub.s32 128, %s299
          %302 = vsyncadd %s291, %s301
          %p303 = scmp.ne.s32.totalorder 0, %s299
          %s304 = smul.addr %s295, 64
          %s305 = scalar_lea.hbm %s1, %s304
          %s306 = smul.u32 4, %s298
          %s307 = sshll.u32 %s294, 4
          %s308 = int_to_ptr.vmem [resolvable:$true] %s307
          %s309 = sshll.u32 %s306, 4
          %313 = dma.hbm_to_vmem [thread:$0]  (%p303), %s305, %s309, %s308, %s291, 64, 64, 4
        $region44: #{tpu_custom_call.1} parent=35 // pred_fallthru
          _
      $region36: #{tpu_custom_call.1} parent=5 // pred_fallthru
        _
      %p314 = scmp.le.s32.totalorder 1, %s23
      %p315 = scmp.lt.s32.totalorder %s23, 3
      %p316 = pnand %p314, %p315
      %p317 = pneg %p316
      // Predicated region
      $region45: #{tpu_custom_call.1} parent=5 // pred_check
        _
      $region46: #{tpu_custom_call.1} parent=5 // pred_check_branch
        %319 = sbr.rel (%p316) target = $region48
      $region47: #{tpu_custom_call.1} parent=5 // pred_region
        %s320 = ssub.s32 %s23, 1
        %s321 = sand.u32 %s36, 1
        %s322 = scalar_lea.sflag [#allocation3], %s321
        %s323 = sand.u32 %s36, 1
        %s324 = smul.addr %s323, 8
        %s325 = scalar_lea.vmem [#allocation2], %s324
        // Predicated region
        $region49: #{tpu_custom_call.1} parent=47 // pred_check
          %p326 = pneg %p49
        $region50: #{tpu_custom_call.1} parent=47 // pred_check_branch
          %328 = sbr.rel (%p326) target = $region52
        $region51: #{tpu_custom_call.1} parent=47 // pred_region
          %329 = dma.done %s322, 128
        $region52: #{tpu_custom_call.1} parent=47 // pred_fallthru
          _
        %s330 = sand.u32 %s28, 1
        %s331 = scalar_lea.sflag [#allocation6], %s330
        %s332 = sand.u32 %s62, 1
        %s333 = smul.addr %s332, 8
        %s334 = scalar_lea.vmem [#allocation5], %s333
        // Predicated region
        $region53: #{tpu_custom_call.1} parent=47 // pred_check
          %p335 = pneg %p75
        $region54: #{tpu_custom_call.1} parent=47 // pred_check_branch
          %337 = sbr.rel (%p335) target = $region56
        $region55: #{tpu_custom_call.1} parent=47 // pred_region
          %338 = dma.done %s331, 128
        $region56: #{tpu_custom_call.1} parent=47 // pred_fallthru
          _
        // Predicated region
        $region57: #{tpu_custom_call.1} parent=47 // pred_check
          %p339 = pneg %p96
        $region58: #{tpu_custom_call.1} parent=47 // pred_check_branch
          %341 = sbr.rel (%p339) target = $region60
        $region59: #{tpu_custom_call.1} parent=47 // pred_region
          %342 = dma.done [#allocation6], 256
        $region60: #{tpu_custom_call.1} parent=47 // pred_fallthru
          _
        // Predicated region
        $region61: #{tpu_custom_call.1} parent=47 // pred_check
          %p343 = pneg %p117
        $region62: #{tpu_custom_call.1} parent=47 // pred_check_branch
          %345 = sbr.rel (%p343) target = $region64
        $region63: #{tpu_custom_call.1} parent=47 // pred_region
          %346 = dma.done [#allocation9], 256
        $region64: #{tpu_custom_call.1} parent=47 // pred_fallthru
          _
        %s347 = sand.u32 %s36, 1
        %s348 = scalar_lea.sflag [#allocation3], %s347
        %s349 = sand.u32 %s36, 1
        %s350 = smul.addr %s349, 8
        %s351 = scalar_lea.vmem [#allocation2], %s350
        %p352 = pneg %p49
        %p353 = pneg %p46
        %s354 = sand.u32 %s28, 1
        %s355 = scalar_lea.sflag [#allocation6], %s354
        %s356 = sand.u32 %s62, 1
        %s357 = smul.addr %s356, 8
        %s358 = scalar_lea.vmem [#allocation5], %s357
        %p359 = pneg %p75
        %p360 = pneg %p72
        %p361 = pneg %p96
        %p362 = pneg %p93
        %p363 = pneg %p117
        %p364 = pneg %p114
        %p365 = pneg %p138
        %p366 = pneg %p135
        %p367 = pneg %p159
        %p368 = pneg %p156
        %p369 = pneg %p180
        %p370 = pneg %p177
        %p371 = pneg %p206
        %p372 = pneg %p203
        %s373 = sand.u32 %s193, 1
        %s374 = scalar_lea.sflag [#allocation4], %s373
        %s375 = sand.u32 %s193, 1
        %s376 = smul.addr %s375, 16
        %s377 = scalar_lea.vmem [#allocation10], %s376
        %s378 = smul.u32 2, %s28
        %s379 = ssub.s32 3, %s378
        %p380 = scmp.lt.s32.totalorder %s379, 2
        %s381 = scalar_select %p380, %s379, 2
        %s382 = smul.u32 64, %s381
        %s383 = smul.u32 2, %s28
        %s384 = ssub.s32 3, %s383
        %p385 = scmp.lt.s32.totalorder %s384, 2
        %s386 = scalar_select %p385, %s384, 2
        %s387 = smul.u32 64, %s386
        %s388 = smul.u32 2, %s28
        %s389 = ssub.s32 3, %s388
        %p390 = scmp.lt.s32.totalorder %s389, 2
        %s391 = scalar_select %p390, %s389, 2
        %s392 = smul.u32 128, %s391
        %v394 = vld [vmem:[%s325] sm:$0xf]
        %v395 = vld [vmem:[%s325 + $0x4] sm:$0xf]
        %v396 = vld [vmem:[#allocation7] sm:$0xf]
        %v397 = vld [vmem:[#allocation7 + $0x4] sm:$0xf]
        %v398 = vld [vmem:[#allocation7 + $0x8] sm:$0xf]
        %v399 = vld [vmem:[#allocation7 + $0xc] sm:$0xf]
        %v400 = vld [vmem:[%s334] sm:$0xf]
        %v401 = vld [vmem:[%s334 + $0x4] sm:$0xf]
        %v402 = vld [vmem:[#allocation8] sm:$0xf]
        %v403 = vld [vmem:[#allocation8 + $0x4] sm:$0xf]
        %v404 = vld [vmem:[#allocation8 + $0x8] sm:$0xf]
        %v405 = vld [vmem:[#allocation8 + $0xc] sm:$0xf]
        %v408 = vunpack.c.l.b16 %v400
        %v409 = vunpack.c.l.b16 %v401
        %v410 = vpack.c.b16 %v409, %v408
        %v415 = vunpack.c.l.b16 %v402
        %v416 = vunpack.c.l.b16 %v403
        %v417 = vunpack.c.l.b16 %v404
        %v418 = vunpack.c.l.b16 %v405
        %v419 = vpack.c.b16 %v416, %v415
        %v420 = vpack.c.b16 %v418, %v417
        %vm423 = vcmask 261120
        %v425 = vsel %vm423, %v410, 0
        %427 = vmatprep.subr.bf16.mxu0 0
        %428 = vmatpush1.bf16.msra.mxu0 %v419
        %429 = vmatprep.subr.bf16.mxu0 0
        %430 = vmatpush1.bf16.msra.mxu0 %v420
        %431 = vmatprep.subr.bf16.mxu0 0
        %432 = vmatpush1.bf16.msra.mxu0 0
        %433 = vmatprep.subr.bf16.mxu0 0
        %434 = vmatpush1.bf16.msra.mxu0 0
        %435 = vmatprep.subr.bf16.mxu0 0
        %436 = vmatpush1.bf16.msra.mxu0 0
        %437 = vmatprep.subr.bf16.mxu0 0
        %438 = vmatpush1.bf16.msra.mxu0 0
        %439 = vmatprep.subr.bf16.mxu0 0
        %440 = vmatpush1.bf16.msra.mxu0 0
        %441 = vmatprep.subr.bf16.mxu0 0
        %442 = vmatpush1.bf16.msra.mxu0 0
        %443 = vmatprep.subr.bf16.mxu0 0
        %444 = vmatpush1.bf16.msra.mxu0 0
        %445 = vmatprep.subr.bf16.mxu0 0
        %446 = vmatpush1.bf16.msra.mxu0 0
        %447 = vmatprep.subr.bf16.mxu0 0
        %448 = vmatpush1.bf16.msra.mxu0 0
        %449 = vmatprep.subr.bf16.mxu0 0
        %450 = vmatpush1.bf16.msra.mxu0 0
        %451 = vmatprep.subr.bf16.mxu0 0
        %452 = vmatpush1.bf16.msra.mxu0 0
        %453 = vmatprep.subr.bf16.mxu0 0
        %454 = vmatpush1.bf16.msra.mxu0 0
        %455 = vmatprep.subr.bf16.mxu0 0
        %456 = vmatpush1.bf16.msra.mxu0 0
        %457 = vmatprep.subr.bf16.mxu0 0
        %458 = vmatpush1.bf16.msra.mxu0 0
        %459 = vmatprep.mubr.bf16.mxu0 0
        %460 = vmatmul.mubr.bf16.gmra.mrb[0].mxu0 %v425
        %v461 = vpop.f32.mrb[0].mxu0
        %v462 = vadd.f32 0.0, %v461
        %v463 = vpop.f32.mrb[0].mxu0
        %v464 = vpop.f32.mrb[0].mxu0
        %v465 = vadd.f32 0.0, %v464
        %v466 = vpop.f32.mrb[0].mxu0
        %467 = vdwg.mxu0
        %v470 = vunpack.c.l.b16 %v394
        %v471 = vunpack.c.l.b16 %v395
        %v472 = vpack.c.b16 %v471, %v470
        %v477 = vunpack.c.l.b16 %v396
        %v478 = vunpack.c.l.b16 %v397
        %v479 = vunpack.c.l.b16 %v398
        %v480 = vunpack.c.l.b16 %v399
        %v481 = vpack.c.b16 %v478, %v477
        %v482 = vpack.c.b16 %v480, %v479
        %v486 = vsel %vm423, %v472, 0
        %488 = vmatprep.subr.bf16.mxu0 0
        %489 = vmatpush1.bf16.msra.mxu0 %v481
        %490 = vmatprep.subr.bf16.mxu0 0
        %491 = vmatpush1.bf16.msra.mxu0 %v482
        %492 = vmatprep.subr.bf16.mxu0 0
        %493 = vmatpush1.bf16.msra.mxu0 0
        %494 = vmatprep.subr.bf16.mxu0 0
        %495 = vmatpush1.bf16.msra.mxu0 0
        %496 = vmatprep.subr.bf16.mxu0 0
        %497 = vmatpush1.bf16.msra.mxu0 0
        %498 = vmatprep.subr.bf16.mxu0 0
        %499 = vmatpush1.bf16.msra.mxu0 0
        %500 = vmatprep.subr.bf16.mxu0 0
        %501 = vmatpush1.bf16.msra.mxu0 0
        %502 = vmatprep.subr.bf16.mxu0 0
        %503 = vmatpush1.bf16.msra.mxu0 0
        %504 = vmatprep.subr.bf16.mxu0 0
        %505 = vmatpush1.bf16.msra.mxu0 0
        %506 = vmatprep.subr.bf16.mxu0 0
        %507 = vmatpush1.bf16.msra.mxu0 0
        %508 = vmatprep.subr.bf16.mxu0 0
        %509 = vmatpush1.bf16.msra.mxu0 0
        %510 = vmatprep.subr.bf16.mxu0 0
        %511 = vmatpush1.bf16.msra.mxu0 0
        %512 = vmatprep.subr.bf16.mxu0 0
        %513 = vmatpush1.bf16.msra.mxu0 0
        %514 = vmatprep.subr.bf16.mxu0 0
        %515 = vmatpush1.bf16.msra.mxu0 0
        %516 = vmatprep.subr.bf16.mxu0 0
        %517 = vmatpush1.bf16.msra.mxu0 0
        %518 = vmatprep.subr.bf16.mxu0 0
        %519 = vmatpush1.bf16.msra.mxu0 0
        %520 = vmatprep.mubr.bf16.mxu0 0
        %521 = vmatmul.mubr.bf16.gmra.mrb[0].mxu0 %v486
        %v522 = vpop.f32.mrb[0].mxu0
        %v523 = vadd.f32 %v462, %v522
        %v524 = vpop.f32.mrb[0].mxu0
        %v525 = vpop.f32.mrb[0].mxu0
        %v526 = vadd.f32 %v465, %v525
        %v527 = vpop.f32.mrb[0].mxu0
        %528 = vdwg.mxu0
        %v529 = vld [vmem:[%s4] sm:$0x1]
        %v531 = vlaneseq
        %v532 = vshrl.u32 %v531, 7
        %v533 = vsub.s32 0, %v532
        %v534 = vrot.slane %v529, %v533
        %v536 = vadd.f32 %v523, %v534
        %v537 = vadd.f32 %v526, %v534
        %v538 = vmax.f32 %v536, 0.0
        %v539 = vmax.f32 %v537, 0.0
        %v540 = vpack.c.bf16 %v539, %v538
        %v541 = vld [vmem:[%s5] sm:$0xf]
        %v542 = vld [vmem:[%s5 + $0x4] sm:$0xf]
        %v543 = vld [vmem:[%s5 + $0x8] sm:$0xf]
        %v544 = vld [vmem:[%s5 + $0xc] sm:$0xf]
        %v545 = vld [vmem:[%s6] sm:$0x1]
        %v547 = vlaneseq
        %v548 = vshrl.u32 %v547, 7
        %v549 = vsub.s32 0, %v548
        %v550 = vrot.slane %v545, %v549
        %v556 = vunpack.c.l.b16 %v541
        %v557 = vunpack.c.l.b16 %v542
        %v558 = vunpack.c.l.b16 %v543
        %v559 = vunpack.c.l.b16 %v544
        %v560 = vpack.c.b16 %v557, %v556
        %v561 = vpack.c.b16 %v559, %v558
        %v565 = vsel %vm423, %v540, 0
        %567 = vmatprep.subr.bf16.mxu0 0
        %568 = vmatpush1.bf16.msra.mxu0 %v560
        %569 = vmatprep.subr.bf16.mxu0 0
        %570 = vmatpush1.bf16.msra.mxu0 %v561
        %571 = vmatprep.subr.bf16.mxu0 0
        %572 = vmatpush1.bf16.msra.mxu0 0
        %573 = vmatprep.subr.bf16.mxu0 0
        %574 = vmatpush1.bf16.msra.mxu0 0
        %575 = vmatprep.subr.bf16.mxu0 0
        %576 = vmatpush1.bf16.msra.mxu0 0
        %577 = vmatprep.subr.bf16.mxu0 0
        %578 = vmatpush1.bf16.msra.mxu0 0
        %579 = vmatprep.subr.bf16.mxu0 0
        %580 = vmatpush1.bf16.msra.mxu0 0
        %581 = vmatprep.subr.bf16.mxu0 0
        %582 = vmatpush1.bf16.msra.mxu0 0
        %583 = vmatprep.subr.bf16.mxu0 0
        %584 = vmatpush1.bf16.msra.mxu0 0
        %585 = vmatprep.subr.bf16.mxu0 0
        %586 = vmatpush1.bf16.msra.mxu0 0
        %587 = vmatprep.subr.bf16.mxu0 0
        %588 = vmatpush1.bf16.msra.mxu0 0
        %589 = vmatprep.subr.bf16.mxu0 0
        %590 = vmatpush1.bf16.msra.mxu0 0
        %591 = vmatprep.subr.bf16.mxu0 0
        %592 = vmatpush1.bf16.msra.mxu0 0
        %593 = vmatprep.subr.bf16.mxu0 0
        %594 = vmatpush1.bf16.msra.mxu0 0
        %595 = vmatprep.subr.bf16.mxu0 0
        %596 = vmatpush1.bf16.msra.mxu0 0
        %597 = vmatprep.subr.bf16.mxu0 0
        %598 = vmatpush1.bf16.msra.mxu0 0
        %599 = vmatprep.mubr.bf16.mxu0 0
        %600 = vmatmul.mubr.bf16.gmra.mrb[0].mxu0 %v565
        %v601 = vpop.f32.mrb[0].mxu0
        %v602 = vadd.f32 %v550, %v601
        %v603 = vpop.f32.mrb[0].mxu0
        %v604 = vpop.f32.mrb[0].mxu0
        %v605 = vadd.f32 %v550, %v604
        %v606 = vpop.f32.mrb[0].mxu0
        %607 = vdwg.mxu0
        %608 = vst.msk [vmem:[%s377] sm:$0xff] %vm423, %v602
        %609 = vst.msk [vmem:[%s377 + $0x8] sm:$0xff] %vm423, %v605
        %s610 = sand.u32 %s193, 1
        %s611 = scalar_lea.sflag [#allocation4], %s610
        %s612 = sand.u32 %s193, 1
        %s613 = smul.addr %s612, 16
        %s614 = scalar_lea.vmem [#allocation10], %s613
        // Predicated region
        $region65: #{tpu_custom_call.1} parent=47 // pred_check
          %p615 = pneg %p203
        $region66: #{tpu_custom_call.1} parent=47 // pred_check_branch
          %617 = sbr.rel (%p615) target = $region68
        $region67: #{tpu_custom_call.1} parent=47 // pred_region
          %s618 = smul.u32 2, %s28
          %s619 = ssub.s32 3, %s618
          %p620 = scmp.lt.s32.totalorder %s619, 2
          %s621 = scalar_select %p620, %s619, 2
          %s622 = smul.u32 128, %s621
          %s624 = ssub.s32 256, %s622
          %625 = vsyncadd %s611, %s624
          %p626 = scmp.ne.s32.totalorder 0, %s622
          %s627 = smul.addr %s618, 128
          %s628 = scalar_lea.hbm %s7, %s627
          %s629 = smul.u32 8, %s621
          %s630 = sshll.u32 %s614, 4
          %s631 = int_to_ptr.vmem [resolvable:$true] %s630
          %s632 = sshll.u32 %s629, 4
          %636 = dma.vmem_to_hbm [thread:$0]  (%p626), %s631, %s632, %s628, %s611, 128, 128, 8
        $region68: #{tpu_custom_call.1} parent=47 // pred_fallthru
          _
      $region48: #{tpu_custom_call.1} parent=5 // pred_fallthru
        _
      %p637 = scmp.le.s32.totalorder 2, %s23
      // Predicated region
      $region69: #{tpu_custom_call.1} parent=5 // pred_check
        %p638 = pneg %p637
      $region70: #{tpu_custom_call.1} parent=5 // pred_check_branch
        %640 = sbr.rel (%p638) target = $region72
      $region71: #{tpu_custom_call.1} parent=5 // pred_region
        %s641 = ssub.s32 %s23, 2
        // Predicated region
        $region73: #{tpu_custom_call.1} parent=71 // pred_check
          %p642 = pneg %p209
        $region74: #{tpu_custom_call.1} parent=71 // pred_check_branch
          %644 = sbr.rel (%p642) target = $region76
        $region75: #{tpu_custom_call.1} parent=71 // pred_region
          %s645 = sand.u32 %s194, 1
          %s646 = scalar_lea.sflag [#allocation4], %s645
          %s647 = sand.u32 %s194, 1
          %s648 = smul.addr %s647, 16
          %s649 = scalar_lea.vmem [#allocation10], %s648
          %650 = dma.done %s646, 256
        $region76: #{tpu_custom_call.1} parent=71 // pred_fallthru
          _
      $region72: #{tpu_custom_call.1} parent=5 // pred_fallthru
        _
    $region6: #{tpu_custom_call.1} parent=1 // loop_footer
      %s27 = sadd.s32 1, %s23
    $region7: #{tpu_custom_call.1} parent=1 // loop_footer_branch
      %22 = sbr.rel target = $region3
    $region8: #{tpu_custom_call.1} parent=1 // loop_exit
      _
    %651 = vsyncpa [#allocation3], 1
    %s652 = scalar_lea.sflag [#allocation3], 1
    %653 = vsyncpa %s652, 1
    %654 = vsyncpa [#allocation6], 1
    %s655 = scalar_lea.sflag [#allocation6], 1
    %656 = vsyncpa %s655, 1
    %657 = vsyncpa [#allocation9], 1
    %658 = vsyncpa [#allocation4], 1
    %s659 = scalar_lea.sflag [#allocation4], 1
    %660 = vsyncpa %s659, 1

</llo_original>
